<compile_context>
chip_gen: v7x
topology: tpu7x:2x2x1
jax: 0.10.0
libtpu: 0.0.40
codegen_flags: <defaults>
</compile_context>

<pallas_src>
import functools

import jax
import jax.numpy as jnp
from jax import lax
from jax.experimental import pallas as pl
from jax.experimental.pallas import tpu as pltpu


def _prenorm_layernorm_kernel(x_ref, gamma_ref, o_ref, *, eps):
    # x_ref: (TB, C, TN) native dtype   gamma_ref: (1, C, 1)   o_ref: (TB, C, TN)
    x = x_ref[...].astype(jnp.float32)                       # in-kernel upcast
    mean = jnp.mean(x, axis=1, keepdims=True)                # reduce over C (sublanes)
    xc = x - mean
    var = jnp.mean(xc * xc, axis=1, keepdims=True)           # population variance
    inv = lax.rsqrt(var + eps)                               # EUP rsqrt
    g = gamma_ref[...].astype(jnp.float32)
    o_ref[...] = (xc * inv * g).astype(o_ref.dtype)          # store in input dtype


def _tpu_generation_info():
    """(vmem_capacity_bytes, tensorcores_per_chip) with conservative fallbacks."""
    vmem_cap = 64 << 20            # v7x per-TC VMEM; safe lower bound for all gens
    num_cores = 1
    try:
        info = pltpu.get_tpu_info()
        cap = getattr(info, "vmem_capacity_bytes", None)
        if cap:
            vmem_cap = int(cap)
    except Exception:
        pass
    try:
        kind = jax.devices()[0].device_kind.lower()
        if "v7" in kind:
            num_cores = 2          # 2 TensorCores per chip on v7x
    except Exception:
        pass
    return vmem_cap, num_cores


def _pick_tiles(b, c, n, itemsize, *, num_cores):
    """Pick (tb, tn): batch rows and lane extent per block.

    tn is a multiple of 128 (or the full n when n <= 128) so stores stay
    unmasked except on the final ragged block; blocks target ~2 MiB of input.
    On multi-core chips we aim for >= 2 grid steps per TensorCore.
    """
    LANE = 128
    target = 2 << 20  # ~2 MiB per input block

    if n <= LANE:
        tn = n
    else:
        n_pad = ((n + LANE - 1) // LANE) * LANE
        max_tn = max(LANE, (target // max(1, c * itemsize)) // LANE * LANE)
        tn = min(max_tn, n_pad)

    tb = max(1, min(b, target // max(1, c * tn * itemsize)))

    def steps(tb_, tn_):
        return -(-b // tb_) * -(-n // tn_)

    min_steps = 2 * num_cores if num_cores > 1 else 1
    while steps(tb, tn) < min_steps and tb > 1:
        tb = (tb + 1) // 2
    while steps(tb, tn) < min_steps and tn > LANE and n > LANE:
        tn = max(LANE, (tn // 2 // LANE) * LANE)
    return tb, tn


def prenorm(x, gamma, fn=None, *, eps=1e-5):
    """x: (b, c, f, h, w). gamma: (1, c, 1, 1, 1). fn: optional JAX callable."""
    b, c, f, h, w = x.shape
    n = f * h * w
    itemsize = jnp.dtype(x.dtype).itemsize

    # Zero-copy views: reduction axis C is already second-to-last in native layout.
    x3 = x.reshape(b, c, n)
    gamma3 = gamma.reshape(1, c, 1)

    vmem_cap, num_cores = _tpu_generation_info()
    tb, tn = _pick_tiles(b, c, n, itemsize, num_cores=num_cores)
    grid = (pl.cdiv(b, tb), pl.cdiv(n, tn))

    # Explicit scoped-VMEM budget: double-buffered in + out blocks, in-kernel f32
    # working set, plus slack -- clamped to hardware capacity.
    in_block_bytes = tb * c * tn * itemsize
    f32_block_bytes = tb * c * tn * 4
    needed = 4 * in_block_bytes + 3 * f32_block_bytes + (1 << 20)
    vmem_limit = int(min(vmem_cap, max(needed, 16 << 20)))

    out3 = pl.pallas_call(
        functools.partial(_prenorm_layernorm_kernel, eps=eps),
        out_shape=jax.ShapeDtypeStruct((b, c, n), x.dtype),
        grid_spec=pltpu.PrefetchScalarGridSpec(
            num_scalar_prefetch=0,
            grid=grid,
            in_specs=[
                pl.BlockSpec((tb, c, tn), lambda i, j: (i, 0, j)),
                pl.BlockSpec((1, c, 1), lambda i, j: (0, 0, 0)),
            ],
            out_specs=pl.BlockSpec((tb, c, tn), lambda i, j: (i, 0, j)),
        ),
        compiler_params=pltpu.CompilerParams(
            dimension_semantics=("parallel", "parallel"),
            vmem_limit_bytes=vmem_limit,
        ),
    )(x3, gamma3)

    out = out3.reshape(b, c, f, h, w)

    if fn is not None:
        out = fn(out)  # TODO(synk): PreNorm.fn is an arbitrary wrapped module; applied outside the kernel.
    return out


def reference(x, gamma, *, eps=1e-5):
    """Pure-JAX mirror of the PyTorch PreNorm/LayerNorm forward (fn == identity)."""
    xf = x.astype(jnp.float32)
    mean = jnp.mean(xf, axis=1, keepdims=True)
    var = jnp.mean((xf - mean) ** 2, axis=1, keepdims=True)
    y = (xf - mean) / jnp.sqrt(var + eps) * gamma.reshape(1, -1, 1, 1, 1).astype(jnp.float32)
    return y.astype(x.dtype)


if __name__ == "__main__":
    # Small shapes consistent with the module's 5-D (b, c, f, h, w) input.
    b, dim, f, h, w = 2, 8, 3, 16, 16

    key = jax.random.PRNGKey(0)
    kx, kg = jax.random.split(key, 2)
    x = jax.random.normal(kx, (b, dim, f, h, w), dtype=jnp.float32)
    # gamma is initialized to ones in the module; perturb so the scale path is exercised.
    gamma = 1.0 + 0.1 * jax.random.normal(kg, (1, dim, 1, 1, 1), dtype=jnp.float32)

    out = prenorm(x, gamma, fn=None)
    out = jax.block_until_ready(out)

    ref = reference(x, gamma)
    assert out.shape == (b, dim, f, h, w)
    assert out.dtype == x.dtype
    assert jnp.allclose(out, ref, rtol=1e-5, atol=1e-5), \
        f"max abs err {jnp.max(jnp.abs(out - ref))}"
    print("KERNEL_OK")
</pallas_src>

<mosaic_0001>
module attributes {stable_mosaic.version = 11 : i64} {
  func.func @_prenorm_layernorm_kernel(%arg0: i32, %arg1: i32, %arg2: memref<2x8x768xf32, #tpu.memory_space<vmem>>, %arg3: memref<1x8x1xf32, #tpu.memory_space<vmem>>, %arg4: memref<2x8x768xf32, #tpu.memory_space<vmem>>) attributes {dimension_semantics = [#tpu.dimension_semantics<parallel>, #tpu.dimension_semantics<parallel>], iteration_bounds = array<i64: 1, 1>, scalar_prefetch = 0 : i64, scratch_operands = 0 : i64, tpu.core_type = #tpu.core_type<tc>, window_params = [{transform_indices = @transform_0, window_bounds = array<i64: 2, 8, 768>}, {pipeline_mode = #tpu.pipeline_mode<synchronous>, transform_indices = @transform_1, window_bounds = array<i64: 1, 8, 1>}, {transform_indices = @transform_2, window_bounds = array<i64: 2, 8, 768>}]} {
    %c0 = arith.constant 0 : index
    %c0_0 = arith.constant 0 : index
    %c0_1 = arith.constant 0 : index
    %0 = vector.load %arg2[%c0, %c0_0, %c0_1] : memref<2x8x768xf32, #tpu.memory_space<vmem>>, vector<2x8x768xf32>
    %cst = arith.constant dense<0.000000e+00> : vector<2x768xf32>
    %1 = vector.multi_reduction <add>, %0, %cst [1] : vector<2x8x768xf32> to vector<2x768xf32>
    %2 = vector.shape_cast %1 : vector<2x768xf32> to vector<2x1x768xf32>
    %cst_2 = arith.constant 8.000000e+00 : f32
    %3 = vector.broadcast %cst_2 : f32 to vector<2x1x768xf32>
    %4 = arith.divf %2, %3 : vector<2x1x768xf32>
    %5 = vector.broadcast %4 : vector<2x1x768xf32> to vector<2x8x768xf32>
    %6 = arith.subf %0, %5 : vector<2x8x768xf32>
    %7 = arith.mulf %6, %6 : vector<2x8x768xf32>
    %cst_3 = arith.constant dense<0.000000e+00> : vector<2x768xf32>
    %8 = vector.multi_reduction <add>, %7, %cst_3 [1] : vector<2x8x768xf32> to vector<2x768xf32>
    %9 = vector.shape_cast %8 : vector<2x768xf32> to vector<2x1x768xf32>
    %cst_4 = arith.constant 8.000000e+00 : f32
    %10 = vector.broadcast %cst_4 : f32 to vector<2x1x768xf32>
    %11 = arith.divf %9, %10 : vector<2x1x768xf32>
    %cst_5 = arith.constant 9.99999974E-6 : f32
    %12 = vector.broadcast %cst_5 : f32 to vector<2x1x768xf32>
    %13 = arith.addf %11, %12 : vector<2x1x768xf32>
    %14 = math.rsqrt %13 : vector<2x1x768xf32>
    %c0_6 = arith.constant 0 : index
    %c0_7 = arith.constant 0 : index
    %c0_8 = arith.constant 0 : index
    %15 = vector.load %arg3[%c0_6, %c0_7, %c0_8] : memref<1x8x1xf32, #tpu.memory_space<vmem>>, vector<1x8x1xf32>
    %16 = vector.broadcast %14 : vector<2x1x768xf32> to vector<2x8x768xf32>
    %17 = arith.mulf %6, %16 : vector<2x8x768xf32>
    %18 = vector.broadcast %15 : vector<1x8x1xf32> to vector<2x8x768xf32>
    %19 = arith.mulf %17, %18 : vector<2x8x768xf32>
    %c0_9 = arith.constant 0 : index
    %c0_10 = arith.constant 0 : index
    %c0_11 = arith.constant 0 : index
    %20 = vector.load %arg4[%c0_9, %c0_10, %c0_11] : memref<2x8x768xf32, #tpu.memory_space<vmem>>, vector<2x8x768xf32>
    tpu.vector_store %arg4[%c0_9, %c0_10, %c0_11], %19 {strides = array<i32>} : memref<2x8x768xf32, #tpu.memory_space<vmem>>, vector<2x8x768xf32>,
    return
  }
  func.func @transform_0(%arg0: i32, %arg1: i32) -> (i32, i32, i32) {
    %c0_i32 = arith.constant 0 : i32
    %c0_i32_0 = arith.constant 0 : i32
    return %arg0, %c0_i32, %arg1 : i32, i32, i32
  }
  func.func @transform_1(%arg0: i32, %arg1: i32) -> (i32, i32, i32) {
    %c0_i32 = arith.constant 0 : i32
    %c0_i32_0 = arith.constant 0 : i32
    %c0_i32_1 = arith.constant 0 : i32
    %c0_i32_2 = arith.constant 0 : i32
    return %c0_i32, %c0_i32_0, %c0_i32_1 : i32, i32, i32
  }
  func.func @transform_2(%arg0: i32, %arg1: i32) -> (i32, i32, i32) {
    %c0_i32 = arith.constant 0 : i32
    %c0_i32_0 = arith.constant 0 : i32
    return %arg0, %c0_i32, %arg1 : i32, i32, i32
  }
}

</mosaic_0001>

<llo_original>
// kernel: tpu_custom_call.1
$region0: #{tpu_custom_call.1}
  #allocation0 [shape = 'u32[]', space=smem, size = 0x4, offset = 0x4, fixed_abs, tag = 'smem constant byte address 0x4 - core index']
  #allocation1 [shape = 'u32[144,128]{1,0:T(1,128)}', space=vmem, size = 0x12000, scoped, tag = 'internal scratch']
  %s0 = inlined_call_operand.hbm [shape: f32[2,8,768], index: 0, kind: input, shape index: {}]
  %s1 = inlined_call_operand.vmem [shape: f32[1,8,1], index: 1, kind: input, shape index: {}]
  %s2 = inlined_call_operand.hbm [shape: f32[2,8,768], index: 2, kind: output, shape index: {}]
  %s3 = sld [smem:[#allocation0]]
  $region22: #{tpu_custom_call.1} parent=0
    _
  %s5 = ssub.s32 1, %s3
  %s6 = scalar_select 0, %s5, %s3
  $region1: #{tpu_custom_call.1} parent=0
    #allocation2 [shape = 'u8[49152]{0}', space=vmem, size = 0xc000, scoped, tag = 'input window, operand 0, single buffered']
    #allocation3 [shape = 's32[1]{0}', space=sflag, size = 0x4, scoped, tag = 'scoped memory for tpu_custom_call.1']
    #allocation4 [shape = 's32[1]{0}', space=sflag, size = 0x4, scoped, tag = 'scoped memory for tpu_custom_call.1']
    #allocation5 [shape = 'u8[49152]{0}', space=vmem, size = 0xc000, scoped, tag = 'output window, operand 0, single buffered']
    %7 = vsyncpa [#allocation3], 0
    %8 = vsyncpa [#allocation4], 0
    // Predicated region
    $region2: #{tpu_custom_call.1} parent=1 // pred_check
      _
    $region3: #{tpu_custom_call.1} parent=1 // pred_check_branch
      %10 = sbr.rel (0) target = $region5
    $region4: #{tpu_custom_call.1} parent=1 // pred_region
      %s12 = ssub.s32 1536, 1536
      %13 = vsyncadd [#allocation3], %s12
      %s14 = sshll.u32 [#allocation2], 4
      %s15 = int_to_ptr.vmem [resolvable:$true] %s14
      %20 = dma.hbm_to_vmem [thread:$0]  %s0, 1536, %s15, [#allocation3], 768, 768, 48
    $region5: #{tpu_custom_call.1} parent=1 // pred_fallthru
      _
    // Predicated region
    $region6: #{tpu_custom_call.1} parent=1 // pred_check
      _
    $region7: #{tpu_custom_call.1} parent=1 // pred_check_branch
      %22 = sbr.rel (0) target = $region9
    $region8: #{tpu_custom_call.1} parent=1 // pred_region
      _
    $region9: #{tpu_custom_call.1} parent=1 // pred_fallthru
      _
    // Predicated region
    $region10: #{tpu_custom_call.1} parent=1 // pred_check
      _
    $region11: #{tpu_custom_call.1} parent=1 // pred_check_branch
      %24 = sbr.rel (0) target = $region13
    $region12: #{tpu_custom_call.1} parent=1 // pred_region
      %25 = dma.done [#allocation3], 1536
    $region13: #{tpu_custom_call.1} parent=1 // pred_fallthru
      _
    %v26 = vld [vmem:[#allocation2] sm:$0xff]
    %v27 = vld [vmem:[#allocation2 + $0x8] sm:$0xff]
    %v28 = vld [vmem:[#allocation2 + $0x10] sm:$0xff]
    %v29 = vld [vmem:[#allocation2 + $0x18] sm:$0xff]
    %v30 = vld [vmem:[#allocation2 + $0x20] sm:$0xff]
    %v31 = vld [vmem:[#allocation2 + $0x28] sm:$0xff]
    %v32 = vld [vmem:[#allocation2 + $0x30] sm:$0xff]
    %v33 = vld [vmem:[#allocation2 + $0x38] sm:$0xff]
    %v34 = vld [vmem:[#allocation2 + $0x40] sm:$0xff]
    %v35 = vld [vmem:[#allocation2 + $0x48] sm:$0xff]
    %v36 = vld [vmem:[#allocation2 + $0x50] sm:$0xff]
    %v37 = vld [vmem:[#allocation2 + $0x58] sm:$0xff]
    %v38 = vrot.slane %v26, 4
    %v39 = vadd.f32 %v26, %v38
    %v40 = vrot.slane %v39, 2
    %v41 = vadd.f32 %v39, %v40
    %v42 = vrot.slane %v41, 1
    %v43 = vadd.f32 %v41, %v42
    %v44 = vrot.slane %v27, 4
    %v45 = vadd.f32 %v27, %v44
    %v46 = vrot.slane %v45, 2
    %v47 = vadd.f32 %v45, %v46
    %v48 = vrot.slane %v47, 1
    %v49 = vadd.f32 %v47, %v48
    %v50 = vrot.slane %v28, 4
    %v51 = vadd.f32 %v28, %v50
    %v52 = vrot.slane %v51, 2
    %v53 = vadd.f32 %v51, %v52
    %v54 = vrot.slane %v53, 1
    %v55 = vadd.f32 %v53, %v54
    %v56 = vrot.slane %v29, 4
    %v57 = vadd.f32 %v29, %v56
    %v58 = vrot.slane %v57, 2
    %v59 = vadd.f32 %v57, %v58
    %v60 = vrot.slane %v59, 1
    %v61 = vadd.f32 %v59, %v60
    %v62 = vrot.slane %v30, 4
    %v63 = vadd.f32 %v30, %v62
    %v64 = vrot.slane %v63, 2
    %v65 = vadd.f32 %v63, %v64
    %v66 = vrot.slane %v65, 1
    %v67 = vadd.f32 %v65, %v66
    %v68 = vrot.slane %v31, 4
    %v69 = vadd.f32 %v31, %v68
    %v70 = vrot.slane %v69, 2
    %v71 = vadd.f32 %v69, %v70
    %v72 = vrot.slane %v71, 1
    %v73 = vadd.f32 %v71, %v72
    %v74 = vrot.slane %v32, 4
    %v75 = vadd.f32 %v32, %v74
    %v76 = vrot.slane %v75, 2
    %v77 = vadd.f32 %v75, %v76
    %v78 = vrot.slane %v77, 1
    %v79 = vadd.f32 %v77, %v78
    %v80 = vrot.slane %v33, 4
    %v81 = vadd.f32 %v33, %v80
    %v82 = vrot.slane %v81, 2
    %v83 = vadd.f32 %v81, %v82
    %v84 = vrot.slane %v83, 1
    %v85 = vadd.f32 %v83, %v84
    %v86 = vrot.slane %v34, 4
    %v87 = vadd.f32 %v34, %v86
    %v88 = vrot.slane %v87, 2
    %v89 = vadd.f32 %v87, %v88
    %v90 = vrot.slane %v89, 1
    %v91 = vadd.f32 %v89, %v90
    %v92 = vrot.slane %v35, 4
    %v93 = vadd.f32 %v35, %v92
    %v94 = vrot.slane %v93, 2
    %v95 = vadd.f32 %v93, %v94
    %v96 = vrot.slane %v95, 1
    %v97 = vadd.f32 %v95, %v96
    %v98 = vrot.slane %v36, 4
    %v99 = vadd.f32 %v36, %v98
    %v100 = vrot.slane %v99, 2
    %v101 = vadd.f32 %v99, %v100
    %v102 = vrot.slane %v101, 1
    %v103 = vadd.f32 %v101, %v102
    %v104 = vrot.slane %v37, 4
    %v105 = vadd.f32 %v37, %v104
    %v106 = vrot.slane %v105, 2
    %v107 = vadd.f32 %v105, %v106
    %v108 = vrot.slane %v107, 1
    %v109 = vadd.f32 %v107, %v108
    %v110 = vrcp.pop 8.0
    %v111 = vmul.f32 %v43, %v110
    %v112 = vmul.f32 %v49, %v110
    %v113 = vmul.f32 %v55, %v110
    %v114 = vmul.f32 %v61, %v110
    %v115 = vmul.f32 %v67, %v110
    %v116 = vmul.f32 %v73, %v110
    %v117 = vmul.f32 %v79, %v110
    %v118 = vmul.f32 %v85, %v110
    %v119 = vmul.f32 %v91, %v110
    %v120 = vmul.f32 %v97, %v110
    %v121 = vmul.f32 %v103, %v110
    %v122 = vmul.f32 %v109, %v110
    %v123 = vsub.f32 %v26, %v111
    %v124 = vsub.f32 %v27, %v112
    %v125 = vsub.f32 %v28, %v113
    %v126 = vsub.f32 %v29, %v114
    %v127 = vsub.f32 %v30, %v115
    %v128 = vsub.f32 %v31, %v116
    %v129 = vsub.f32 %v32, %v117
    %v130 = vsub.f32 %v33, %v118
    %v131 = vsub.f32 %v34, %v119
    %v132 = vsub.f32 %v35, %v120
    %v133 = vsub.f32 %v36, %v121
    %v134 = vsub.f32 %v37, %v122
    %v135 = vmul.f32 %v123, %v123
    %v136 = vmul.f32 %v124, %v124
    %v137 = vmul.f32 %v125, %v125
    %v138 = vmul.f32 %v126, %v126
    %v139 = vmul.f32 %v127, %v127
    %v140 = vmul.f32 %v128, %v128
    %v141 = vmul.f32 %v129, %v129
    %v142 = vmul.f32 %v130, %v130
    %v143 = vmul.f32 %v131, %v131
    %v144 = vmul.f32 %v132, %v132
    %v145 = vmul.f32 %v133, %v133
    %v146 = vmul.f32 %v134, %v134
    %v147 = vrot.slane %v135, 4
    %v148 = vadd.f32 %v135, %v147
    %v149 = vrot.slane %v148, 2
    %v150 = vadd.f32 %v148, %v149
    %v151 = vrot.slane %v150, 1
    %v152 = vadd.f32 %v150, %v151
    %v153 = vrot.slane %v136, 4
    %v154 = vadd.f32 %v136, %v153
    %v155 = vrot.slane %v154, 2
    %v156 = vadd.f32 %v154, %v155
    %v157 = vrot.slane %v156, 1
    %v158 = vadd.f32 %v156, %v157
    %v159 = vrot.slane %v137, 4
    %v160 = vadd.f32 %v137, %v159
    %v161 = vrot.slane %v160, 2
    %v162 = vadd.f32 %v160, %v161
    %v163 = vrot.slane %v162, 1
    %v164 = vadd.f32 %v162, %v163
    %v165 = vrot.slane %v138, 4
    %v166 = vadd.f32 %v138, %v165
    %v167 = vrot.slane %v166, 2
    %v168 = vadd.f32 %v166, %v167
    %v169 = vrot.slane %v168, 1
    %v170 = vadd.f32 %v168, %v169
    %v171 = vrot.slane %v139, 4
    %v172 = vadd.f32 %v139, %v171
    %v173 = vrot.slane %v172, 2
    %v174 = vadd.f32 %v172, %v173
    %v175 = vrot.slane %v174, 1
    %v176 = vadd.f32 %v174, %v175
    %v177 = vrot.slane %v140, 4
    %v178 = vadd.f32 %v140, %v177
    %v179 = vrot.slane %v178, 2
    %v180 = vadd.f32 %v178, %v179
    %v181 = vrot.slane %v180, 1
    %v182 = vadd.f32 %v180, %v181
    %v183 = vrot.slane %v141, 4
    %v184 = vadd.f32 %v141, %v183
    %v185 = vrot.slane %v184, 2
    %v186 = vadd.f32 %v184, %v185
    %v187 = vrot.slane %v186, 1
    %v188 = vadd.f32 %v186, %v187
    %v189 = vrot.slane %v142, 4
    %v190 = vadd.f32 %v142, %v189
    %v191 = vrot.slane %v190, 2
    %v192 = vadd.f32 %v190, %v191
    %v193 = vrot.slane %v192, 1
    %v194 = vadd.f32 %v192, %v193
    %v195 = vrot.slane %v143, 4
    %v196 = vadd.f32 %v143, %v195
    %v197 = vrot.slane %v196, 2
    %v198 = vadd.f32 %v196, %v197
    %v199 = vrot.slane %v198, 1
    %v200 = vadd.f32 %v198, %v199
    %v201 = vrot.slane %v144, 4
    %v202 = vadd.f32 %v144, %v201
    %v203 = vrot.slane %v202, 2
    %v204 = vadd.f32 %v202, %v203
    %v205 = vrot.slane %v204, 1
    %v206 = vadd.f32 %v204, %v205
    %v207 = vrot.slane %v145, 4
    %v208 = vadd.f32 %v145, %v207
    %v209 = vrot.slane %v208, 2
    %v210 = vadd.f32 %v208, %v209
    %v211 = vrot.slane %v210, 1
    %v212 = vadd.f32 %v210, %v211
    %v213 = vrot.slane %v146, 4
    %v214 = vadd.f32 %v146, %v213
    %v215 = vrot.slane %v214, 2
    %v216 = vadd.f32 %v214, %v215
    %v217 = vrot.slane %v216, 1
    %v218 = vadd.f32 %v216, %v217
    %v219 = vmul.f32 %v152, %v110
    %v220 = vmul.f32 %v158, %v110
    %v221 = vmul.f32 %v164, %v110
    %v222 = vmul.f32 %v170, %v110
    %v223 = vmul.f32 %v176, %v110
    %v224 = vmul.f32 %v182, %v110
    %v225 = vmul.f32 %v188, %v110
    %v226 = vmul.f32 %v194, %v110
    %v227 = vmul.f32 %v200, %v110
    %v228 = vmul.f32 %v206, %v110
    %v229 = vmul.f32 %v212, %v110
    %v230 = vmul.f32 %v218, %v110
    %v231 = vadd.f32 %v219, 1e-05
    %v232 = vadd.f32 %v220, 1e-05
    %v233 = vadd.f32 %v221, 1e-05
    %v234 = vadd.f32 %v222, 1e-05
    %v235 = vadd.f32 %v223, 1e-05
    %v236 = vadd.f32 %v224, 1e-05
    %v237 = vadd.f32 %v225, 1e-05
    %v238 = vadd.f32 %v226, 1e-05
    %v239 = vadd.f32 %v227, 1e-05
    %v240 = vadd.f32 %v228, 1e-05
    %v241 = vadd.f32 %v229, 1e-05
    %v242 = vadd.f32 %v230, 1e-05
    %v243 = vrsqrt.pop %v231
    %v244 = vrsqrt.pop %v232
    %v245 = vrsqrt.pop %v233
    %v246 = vrsqrt.pop %v234
    %v247 = vrsqrt.pop %v235
    %v248 = vrsqrt.pop %v236
    %v249 = vrsqrt.pop %v237
    %v250 = vrsqrt.pop %v238
    %v251 = vrsqrt.pop %v239
    %v252 = vrsqrt.pop %v240
    %v253 = vrsqrt.pop %v241
    %v254 = vrsqrt.pop %v242
    %v255 = vld [vmem:[%s1] sm:$0xff]
    %v256 = vmul.f32 %v123, %v243
    %v257 = vmul.f32 %v124, %v244
    %v258 = vmul.f32 %v125, %v245
    %v259 = vmul.f32 %v126, %v246
    %v260 = vmul.f32 %v127, %v247
    %v261 = vmul.f32 %v128, %v248
    %v262 = vmul.f32 %v129, %v249
    %v263 = vmul.f32 %v130, %v250
    %v264 = vmul.f32 %v131, %v251
    %v265 = vmul.f32 %v132, %v252
    %v266 = vmul.f32 %v133, %v253
    %v267 = vmul.f32 %v134, %v254
    %269 = vset.pattern.permute.xlu0 0
    %270 = vperm.xlu0 %269, %v255
    %v271 = vpop.permute.xlu0 %270
    %v273 = vmul.f32 %v256, %v271
    %v274 = vmul.f32 %v257, %v271
    %v275 = vmul.f32 %v258, %v271
    %v276 = vmul.f32 %v259, %v271
    %v277 = vmul.f32 %v260, %v271
    %v278 = vmul.f32 %v261, %v271
    %v279 = vmul.f32 %v262, %v271
    %v280 = vmul.f32 %v263, %v271
    %v281 = vmul.f32 %v264, %v271
    %v282 = vmul.f32 %v265, %v271
    %v283 = vmul.f32 %v266, %v271
    %v284 = vmul.f32 %v267, %v271
    %285 = vst [vmem:[#allocation5] sm:$0xff] %v273
    %286 = vst [vmem:[#allocation5 + $0x8] sm:$0xff] %v274
    %287 = vst [vmem:[#allocation5 + $0x10] sm:$0xff] %v275
    %288 = vst [vmem:[#allocation5 + $0x18] sm:$0xff] %v276
    %289 = vst [vmem:[#allocation5 + $0x20] sm:$0xff] %v277
    %290 = vst [vmem:[#allocation5 + $0x28] sm:$0xff] %v278
    %291 = vst [vmem:[#allocation5 + $0x30] sm:$0xff] %v279
    %292 = vst [vmem:[#allocation5 + $0x38] sm:$0xff] %v280
    %293 = vst [vmem:[#allocation5 + $0x40] sm:$0xff] %v281
    %294 = vst [vmem:[#allocation5 + $0x48] sm:$0xff] %v282
    %295 = vst [vmem:[#allocation5 + $0x50] sm:$0xff] %v283
    %296 = vst [vmem:[#allocation5 + $0x58] sm:$0xff] %v284
    // Predicated region
    $region14: #{tpu_custom_call.1} parent=1 // pred_check
      _
    $region15: #{tpu_custom_call.1} parent=1 // pred_check_branch
      %298 = sbr.rel (0) target = $region17
    $region16: #{tpu_custom_call.1} parent=1 // pred_region
      %s300 = ssub.s32 1536, 1536
      %301 = vsyncadd [#allocation4], %s300
      %s302 = sshll.u32 [#allocation5], 4
      %s303 = int_to_ptr.vmem [resolvable:$true] %s302
      %308 = dma.vmem_to_hbm [thread:$0]  %s303, 1536, %s2, [#allocation4], 768, 768, 48
    $region17: #{tpu_custom_call.1} parent=1 // pred_fallthru
      _
    // Predicated region
    $region18: #{tpu_custom_call.1} parent=1 // pred_check
      _
    $region19: #{tpu_custom_call.1} parent=1 // pred_check_branch
      %310 = sbr.rel (0) target = $region21
    $region20: #{tpu_custom_call.1} parent=1 // pred_region
      %311 = dma.done [#allocation4], 1536
    $region21: #{tpu_custom_call.1} parent=1 // pred_fallthru
      _
    %312 = vsyncpa [#allocation3], 1
    %313 = vsyncpa [#allocation4], 1

</llo_original>
